<compile_context>
chip_gen: v7x
topology: tpu7x:2x2x1
jax: 0.10.0
libtpu: 0.0.40
codegen_flags: <defaults>
</compile_context>

<pallas_src>
import jax
import jax.numpy as jnp
from jax.experimental import pallas as pl
from jax.experimental.pallas import tpu as pltpu

D_IN = 32      # input / output feature dim
D_HID = 64     # hidden dim per branch
PACK = 4       # original rows packed per 128-lane slab row (4 * 32 = 128)


def ffn_kernel(x_ref, wg_ref, wv_ref, bg_ref, bv_ref, w3_ref, b3_ref, o_ref):
    # x tile arrives in its native dtype (no wrapper-side cast / extra HBM
    # pass); cast to bf16 on the VPU right before the MXU pushes -- free under
    # the DMA in this memory-bound kernel.
    xb = x_ref[...].astype(jnp.bfloat16)                       # (tm4, 128)
    # gate / value projections: two lane-aligned (128 -> 256) matmuls,
    # f32 accumulation.
    h_g = jnp.dot(xb, wg_ref[...], preferred_element_type=jnp.float32) + bg_ref[...]
    h_v = jnp.dot(xb, wv_ref[...], preferred_element_type=jnp.float32) + bv_ref[...]
    # silu(gate) * value -- full-width vregs, no lane slicing / rolls needed.
    gated = (h_g * jax.nn.sigmoid(h_g)) * h_v                  # (tm4, 256) f32
    # down projection kept in f32 for accuracy (MXU has plenty of slack).
    out = jnp.dot(gated, w3_ref[...], preferred_element_type=jnp.float32) + b3_ref[...]
    o_ref[...] = out.astype(o_ref.dtype)                       # (tm4, 128)


def _round_up(x, m):
    return ((x + m - 1) // m) * m


def _plan_tiles(B):
    """Return (tile_rows, padded_rows) in units of original 32-feature rows.

    tile_rows is a multiple of 32 so the packed slab tile has >= 8 aligned
    sublane rows.  Awkward batch sizes are padded up (pad cost is negligible:
    128 lanes * pad rows), never tiled down to tiny blocks.
    """
    if B <= 512:
        bp = _round_up(B, 32)                 # one block, zero grid-step overhead
        return bp, bp
    if B <= 4096:
        # >= 4 blocks: both v7x TensorCores get work and DMA/compute pipeline.
        tm = _round_up(-(-B // 4), 32)
        return tm, tm * 4
    # Large batches: ~8192-row tiles amortize the ~0.35us/step grid overhead
    # while keeping per-tile VMEM (~15 MiB incl. f32 intermediates) sane.
    nblk = max(2, -(-B // 8192))
    tm = _round_up(-(-B // nblk), 32)
    return tm, tm * nblk


def _block_diag(w, n=PACK):
    """(din, dout) -> (n*din, n*dout) block-diagonal replication."""
    din, dout = w.shape
    eye = jnp.eye(n, dtype=w.dtype)
    blocks = eye[:, :, None, None] * w[None, None, :, :]       # (n, n, din, dout)
    return blocks.transpose(0, 2, 1, 3).reshape(n * din, n * dout)


def feed_forward(x, w1, b1, w2, b2, w3, b3, *, tm=None, out_dtype=None,
                 weight_dtype=jnp.bfloat16):
    B, d_in = x.shape
    assert d_in == D_IN
    # Output dtype is a parameter: pass jnp.bfloat16 to halve writeback traffic
    # when the consumer tolerates it.
    out_dtype = x.dtype if out_dtype is None else out_dtype

    if tm is None:
        tm, b_pad = _plan_tiles(B)
    else:
        tm = _round_up(tm, 32)
        b_pad = _round_up(B, tm)
    assert tm % PACK == 0 and b_pad % tm == 0

    # Lane-dense packing: 4 consecutive rows -> one 128-lane slab row.
    # The reshape is free on contiguous HBM; padding rows are sliced off below.
    xs = x if b_pad == B else jnp.pad(x, ((0, b_pad - B), (0, 0)))
    xs = xs.reshape(b_pad // PACK, PACK * D_IN)                 # (B/4, 128)

    # Block-diagonal (per packed row) weights keep both input and output
    # lane-dense.  Up-projection weights stream in bf16; down-projection and
    # all biases stay f32.
    wg = _block_diag(w1.astype(weight_dtype))                   # (128, 256)
    wv = _block_diag(w2.astype(weight_dtype))                   # (128, 256)
    w3d = _block_diag(w3.astype(jnp.float32))                   # (256, 128)
    bg = jnp.tile(b1.reshape(1, D_HID).astype(jnp.float32), (1, PACK))   # (1, 256)
    bv = jnp.tile(b2.reshape(1, D_HID).astype(jnp.float32), (1, PACK))   # (1, 256)
    b3t = jnp.tile(b3.reshape(1, D_IN).astype(jnp.float32), (1, PACK))   # (1, 128)

    tm4 = tm // PACK
    grid = (b_pad // tm,)

    # NOTE: if a profile ever shows exposed input DMA, pipeline_mode=
    # pl.Buffered(3) on the x BlockSpec is cheap insurance (low priority).
    out = pl.pallas_call(
        ffn_kernel,
        out_shape=jax.ShapeDtypeStruct((b_pad // PACK, PACK * D_IN), out_dtype),
        grid_spec=pltpu.PrefetchScalarGridSpec(
            num_scalar_prefetch=0,
            grid=grid,
            in_specs=[
                pl.BlockSpec((tm4, PACK * D_IN), lambda i: (i, 0)),        # x slab
                pl.BlockSpec((PACK * D_IN, PACK * D_HID), lambda i: (0, 0)),  # Wg
                pl.BlockSpec((PACK * D_IN, PACK * D_HID), lambda i: (0, 0)),  # Wv
                pl.BlockSpec((1, PACK * D_HID), lambda i: (0, 0)),            # bg
                pl.BlockSpec((1, PACK * D_HID), lambda i: (0, 0)),            # bv
                pl.BlockSpec((PACK * D_HID, PACK * D_IN), lambda i: (0, 0)),  # W3
                pl.BlockSpec((1, PACK * D_IN), lambda i: (0, 0)),             # b3
            ],
            out_specs=pl.BlockSpec((tm4, PACK * D_IN), lambda i: (i, 0)),
        ),
        compiler_params=pltpu.CompilerParams(
            dimension_semantics=("parallel",),         # v7x: shard across 2 TCs
            vmem_limit_bytes=32 * 1024 * 1024,          # big tiles OK on v5e too
        ),
    )(xs, wg, wv, bg, bv, w3d, b3t)

    out = out.reshape(b_pad, D_IN)                      # free un-pack
    return out if b_pad == B else out[:B]


def feed_forward_ref(x, w1, b1, w2, b2, w3, b3):
    h1 = x @ w1 + b1
    h2 = x @ w2 + b2
    return (jax.nn.silu(h1) * h2) @ w3 + b3


if __name__ == "__main__":
    key = jax.random.PRNGKey(0)
    kx, k1, kb1, k2, kb2, k3, kb3 = jax.random.split(key, 7)

    B = 16
    x = jax.random.normal(kx, (B, D_IN), dtype=jnp.float32)

    # deterministic synthetic params (weights stored transposed [in, out];
    # biases kept 2-D (1, out))
    w1 = jax.random.normal(k1, (D_IN, D_HID), dtype=jnp.float32) * 0.1
    b1 = jax.random.normal(kb1, (1, D_HID), dtype=jnp.float32) * 0.1
    w2 = jax.random.normal(k2, (D_IN, D_HID), dtype=jnp.float32) * 0.1
    b2 = jax.random.normal(kb2, (1, D_HID), dtype=jnp.float32) * 0.1
    w3 = jax.random.normal(k3, (D_HID, D_IN), dtype=jnp.float32) * 0.1
    b3 = jax.random.normal(kb3, (1, D_IN), dtype=jnp.float32) * 0.1

    out = feed_forward(x, w1, b1, w2, b2, w3, b3)
    out = jax.block_until_ready(out)

    ref = feed_forward_ref(x, w1, b1, w2, b2, w3, b3)
    assert out.shape == (B, D_IN)
    # bf16 up-projection streaming with f32 accumulation -> loose tolerance
    assert jnp.allclose(out, ref, atol=2e-2, rtol=2e-2)

    print("KERNEL_OK")
</pallas_src>

<mosaic_0001>
module attributes {stable_mosaic.version = 11 : i64} {
  func.func @ffn_kernel(%arg0: i32, %arg1: memref<8x128xf32, #tpu.memory_space<vmem>>, %arg2: memref<128x256xbf16, #tpu.memory_space<vmem>>, %arg3: memref<128x256xbf16, #tpu.memory_space<vmem>>, %arg4: memref<1x256xf32, #tpu.memory_space<vmem>>, %arg5: memref<1x256xf32, #tpu.memory_space<vmem>>, %arg6: memref<256x128xf32, #tpu.memory_space<vmem>>, %arg7: memref<1x128xf32, #tpu.memory_space<vmem>>, %arg8: memref<8x128xf32, #tpu.memory_space<vmem>>) attributes {dimension_semantics = [#tpu.dimension_semantics<parallel>], iteration_bounds = array<i64: 1>, scalar_prefetch = 0 : i64, scratch_operands = 0 : i64, tpu.core_type = #tpu.core_type<tc>, window_params = [{transform_indices = @transform_0, window_bounds = array<i64: 8, 128>}, {pipeline_mode = #tpu.pipeline_mode<synchronous>, transform_indices = @transform_1, window_bounds = array<i64: 128, 256>}, {pipeline_mode = #tpu.pipeline_mode<synchronous>, transform_indices = @transform_2, window_bounds = array<i64: 128, 256>}, {pipeline_mode = #tpu.pipeline_mode<synchronous>, transform_indices = @transform_3, window_bounds = array<i64: 1, 256>}, {pipeline_mode = #tpu.pipeline_mode<synchronous>, transform_indices = @transform_4, window_bounds = array<i64: 1, 256>}, {pipeline_mode = #tpu.pipeline_mode<synchronous>, transform_indices = @transform_5, window_bounds = array<i64: 256, 128>}, {pipeline_mode = #tpu.pipeline_mode<synchronous>, transform_indices = @transform_6, window_bounds = array<i64: 1, 128>}, {transform_indices = @transform_7, window_bounds = array<i64: 8, 128>}]} {
    %c0 = arith.constant 0 : index
    %c0_0 = arith.constant 0 : index
    %0 = vector.load %arg1[%c0, %c0_0] : memref<8x128xf32, #tpu.memory_space<vmem>>, vector<8x128xf32>
    %1 = arith.truncf %0 : vector<8x128xf32> to vector<8x128xbf16>
    %c0_1 = arith.constant 0 : index
    %c0_2 = arith.constant 0 : index
    %2 = vector.load %arg2[%c0_1, %c0_2] : memref<128x256xbf16, #tpu.memory_space<vmem>>, vector<128x256xbf16>
    %cst = arith.constant dense<0.000000e+00> : vector<8x256xf32>
    %3 = tpu.matmul %1, %2, %cst {dimension_numbers = #tpu.dot_dimension_numbers<[1], [0], [0], [1], [0, 0, 1, 1], [], []>} : vector<8x128xbf16>, vector<128x256xbf16>, vector<8x256xf32> -> vector<8x256xf32>
    %c0_3 = arith.constant 0 : index
    %c0_4 = arith.constant 0 : index
    %4 = vector.load %arg4[%c0_3, %c0_4] : memref<1x256xf32, #tpu.memory_space<vmem>>, vector<1x256xf32>
    %5 = vector.broadcast %4 : vector<1x256xf32> to vector<8x256xf32>
    %6 = arith.addf %3, %5 : vector<8x256xf32>
    %c0_5 = arith.constant 0 : index
    %c0_6 = arith.constant 0 : index
    %7 = vector.load %arg3[%c0_5, %c0_6] : memref<128x256xbf16, #tpu.memory_space<vmem>>, vector<128x256xbf16>
    %cst_7 = arith.constant dense<0.000000e+00> : vector<8x256xf32>
    %8 = tpu.matmul %1, %7, %cst_7 {dimension_numbers = #tpu.dot_dimension_numbers<[1], [0], [0], [1], [0, 0, 1, 1], [], []>} : vector<8x128xbf16>, vector<128x256xbf16>, vector<8x256xf32> -> vector<8x256xf32>
    %c0_8 = arith.constant 0 : index
    %c0_9 = arith.constant 0 : index
    %9 = vector.load %arg5[%c0_8, %c0_9] : memref<1x256xf32, #tpu.memory_space<vmem>>, vector<1x256xf32>
    %10 = vector.broadcast %9 : vector<1x256xf32> to vector<8x256xf32>
    %11 = arith.addf %8, %10 : vector<8x256xf32>
    %12 = arith.negf %6 : vector<8x256xf32>
    %13 = math.exp %12 : vector<8x256xf32>
    %cst_10 = arith.constant 1.000000e+00 : f32
    %14 = vector.broadcast %cst_10 : f32 to vector<8x256xf32>
    %15 = arith.addf %14, %13 : vector<8x256xf32>
    %16 = arith.divf %14, %15 : vector<8x256xf32>
    %17 = arith.mulf %6, %16 : vector<8x256xf32>
    %18 = arith.mulf %17, %11 : vector<8x256xf32>
    %c0_11 = arith.constant 0 : index
    %c0_12 = arith.constant 0 : index
    %19 = vector.load %arg6[%c0_11, %c0_12] : memref<256x128xf32, #tpu.memory_space<vmem>>, vector<256x128xf32>
    %cst_13 = arith.constant dense<0.000000e+00> : vector<8x128xf32>
    %20 = tpu.matmul %18, %19, %cst_13 {dimension_numbers = #tpu.dot_dimension_numbers<[1], [0], [0], [1], [0, 0, 1, 1], [], []>} : vector<8x256xf32>, vector<256x128xf32>, vector<8x128xf32> -> vector<8x128xf32>
    %c0_14 = arith.constant 0 : index
    %c0_15 = arith.constant 0 : index
    %21 = vector.load %arg7[%c0_14, %c0_15] : memref<1x128xf32, #tpu.memory_space<vmem>>, vector<1x128xf32>
    %22 = vector.broadcast %21 : vector<1x128xf32> to vector<8x128xf32>
    %23 = arith.addf %20, %22 : vector<8x128xf32>
    %c0_16 = arith.constant 0 : index
    %c0_17 = arith.constant 0 : index
    %24 = vector.load %arg8[%c0_16, %c0_17] : memref<8x128xf32, #tpu.memory_space<vmem>>, vector<8x128xf32>
    tpu.vector_store %arg8[%c0_16, %c0_17], %23 {strides = array<i32>} : memref<8x128xf32, #tpu.memory_space<vmem>>, vector<8x128xf32>,
    return
  }
  func.func @transform_0(%arg0: i32) -> (i32, i32) {
    %c0_i32 = arith.constant 0 : i32
    %c0_i32_0 = arith.constant 0 : i32
    return %arg0, %c0_i32 : i32, i32
  }
  func.func @transform_1(%arg0: i32) -> (i32, i32) {
    %c0_i32 = arith.constant 0 : i32
    %c0_i32_0 = arith.constant 0 : i32
    %c0_i32_1 = arith.constant 0 : i32
    return %c0_i32, %c0_i32_0 : i32, i32
  }
  func.func @transform_2(%arg0: i32) -> (i32, i32) {
    %c0_i32 = arith.constant 0 : i32
    %c0_i32_0 = arith.constant 0 : i32
    %c0_i32_1 = arith.constant 0 : i32
    return %c0_i32, %c0_i32_0 : i32, i32
  }
  func.func @transform_3(%arg0: i32) -> (i32, i32) {
    %c0_i32 = arith.constant 0 : i32
    %c0_i32_0 = arith.constant 0 : i32
    %c0_i32_1 = arith.constant 0 : i32
    return %c0_i32, %c0_i32_0 : i32, i32
  }
  func.func @transform_4(%arg0: i32) -> (i32, i32) {
    %c0_i32 = arith.constant 0 : i32
    %c0_i32_0 = arith.constant 0 : i32
    %c0_i32_1 = arith.constant 0 : i32
    return %c0_i32, %c0_i32_0 : i32, i32
  }
  func.func @transform_5(%arg0: i32) -> (i32, i32) {
    %c0_i32 = arith.constant 0 : i32
    %c0_i32_0 = arith.constant 0 : i32
    %c0_i32_1 = arith.constant 0 : i32
    return %c0_i32, %c0_i32_0 : i32, i32
  }
  func.func @transform_6(%arg0: i32) -> (i32, i32) {
    %c0_i32 = arith.constant 0 : i32
    %c0_i32_0 = arith.constant 0 : i32
    %c0_i32_1 = arith.constant 0 : i32
    return %c0_i32, %c0_i32_0 : i32, i32
  }
  func.func @transform_7(%arg0: i32) -> (i32, i32) {
    %c0_i32 = arith.constant 0 : i32
    %c0_i32_0 = arith.constant 0 : i32
    return %arg0, %c0_i32 : i32, i32
  }
}

</mosaic_0001>

<llo_original>
// kernel: tpu_custom_call.1
$region0: #{tpu_custom_call.1}
  #allocation0 [shape = 'u32[]', space=smem, size = 0x4, offset = 0x4, fixed_abs, tag = 'smem constant byte address 0x4 - core index']
  #allocation1 [shape = 'u32[144,128]{1,0:T(1,128)}', space=vmem, size = 0x12000, scoped, tag = 'internal scratch']
  %s0 = inlined_call_operand.hbm [shape: f32[8,128], index: 0, kind: input, shape index: {}]
  %s1 = inlined_call_operand.hbm [shape: bf16[128,256], index: 1, kind: input, shape index: {}]
  %s2 = inlined_call_operand.hbm [shape: bf16[128,256], index: 2, kind: input, shape index: {}]
  %s3 = inlined_call_operand.vmem [shape: f32[1,256], index: 3, kind: input, shape index: {}]
  %s4 = inlined_call_operand.vmem [shape: f32[1,256], index: 4, kind: input, shape index: {}]
  %s5 = inlined_call_operand.hbm [shape: f32[256,128], index: 5, kind: input, shape index: {}]
  %s6 = inlined_call_operand.vmem [shape: f32[1,128], index: 6, kind: input, shape index: {}]
  %s7 = inlined_call_operand.hbm [shape: f32[8,128], index: 7, kind: output, shape index: {}]
  %s8 = sld [smem:[#allocation0]]
  $region54: #{tpu_custom_call.1} parent=0
    _
  %s10 = ssub.s32 1, %s8
  %s11 = scalar_select 0, %s10, %s8
  $region1: #{tpu_custom_call.1} parent=0
    #allocation2 [shape = 'u8[4096]{0}', space=vmem, size = 0x1000, scoped, tag = 'input window, operand 0, single buffered']
    #allocation3 [shape = 's32[1]{0}', space=sflag, size = 0x4, scoped, tag = 'scoped memory for tpu_custom_call.1']
    #allocation4 [shape = 's32[1]{0}', space=sflag, size = 0x4, scoped, tag = 'scoped memory for tpu_custom_call.1']
    #allocation5 [shape = 'u8[65536]{0}', space=vmem, size = 0x10000, scoped, tag = 'input window, operand 1, single buffered']
    #allocation6 [shape = 's32[1]{0}', space=sflag, size = 0x4, scoped, tag = 'scoped memory for tpu_custom_call.1']
    #allocation7 [shape = 'u8[65536]{0}', space=vmem, size = 0x10000, scoped, tag = 'input window, operand 2, single buffered']
    #allocation8 [shape = 'u8[131072]{0}', space=vmem, size = 0x20000, scoped, tag = 'input window, operand 5, single buffered']
    #allocation9 [shape = 's32[1]{0}', space=sflag, size = 0x4, scoped, tag = 'scoped memory for tpu_custom_call.1']
    #allocation10 [shape = 'u8[4096]{0}', space=vmem, size = 0x1000, scoped, tag = 'output window, operand 0, single buffered']
    %12 = vsyncpa [#allocation3], 0
    %13 = vsyncpa [#allocation6], 0
    %14 = vsyncpa [#allocation9], 0
    %15 = vsyncpa [#allocation4], 0
    // Predicated region
    $region2: #{tpu_custom_call.1} parent=1 // pred_check
      _
    $region3: #{tpu_custom_call.1} parent=1 // pred_check_branch
      %17 = sbr.rel (0) target = $region5
    $region4: #{tpu_custom_call.1} parent=1 // pred_region
      %s19 = ssub.s32 128, 128
      %20 = vsyncadd [#allocation3], %s19
      %s22 = sshll.u32 [#allocation2], 4
      %s23 = int_to_ptr.vmem [resolvable:$true] %s22
      %25 = dma.hbm_to_vmem [thread:$0]  %s0, 128, %s23, [#allocation3]
    $region5: #{tpu_custom_call.1} parent=1 // pred_fallthru
      _
    // Predicated region
    $region6: #{tpu_custom_call.1} parent=1 // pred_check
      _
    $region7: #{tpu_custom_call.1} parent=1 // pred_check_branch
      %27 = sbr.rel (0) target = $region9
    $region8: #{tpu_custom_call.1} parent=1 // pred_region
      %s29 = ssub.s32 2048, 2048
      %30 = vsyncadd [#allocation6], %s29
      %s31 = sshll.u32 [#allocation5], 4
      %s32 = int_to_ptr.vmem [resolvable:$true] %s31
      %37 = dma.hbm_to_vmem [thread:$0]  %s1, 2048, %s32, [#allocation6], 128, 128, 8
    $region9: #{tpu_custom_call.1} parent=1 // pred_fallthru
      _
    // Predicated region
    $region10: #{tpu_custom_call.1} parent=1 // pred_check
      _
    $region11: #{tpu_custom_call.1} parent=1 // pred_check_branch
      %39 = sbr.rel (0) target = $region13
    $region12: #{tpu_custom_call.1} parent=1 // pred_region
      %s41 = ssub.s32 2048, 2048
      %42 = vsyncadd [#allocation6], %s41
      %s43 = sshll.u32 [#allocation7], 4
      %s44 = int_to_ptr.vmem [resolvable:$true] %s43
      %49 = dma.hbm_to_vmem [thread:$0]  %s2, 2048, %s44, [#allocation6], 128, 128, 8
    $region13: #{tpu_custom_call.1} parent=1 // pred_fallthru
      _
    // Predicated region
    $region14: #{tpu_custom_call.1} parent=1 // pred_check
      _
    $region15: #{tpu_custom_call.1} parent=1 // pred_check_branch
      %51 = sbr.rel (0) target = $region17
    $region16: #{tpu_custom_call.1} parent=1 // pred_region
      _
    $region17: #{tpu_custom_call.1} parent=1 // pred_fallthru
      _
    // Predicated region
    $region18: #{tpu_custom_call.1} parent=1 // pred_check
      _
    $region19: #{tpu_custom_call.1} parent=1 // pred_check_branch
      %53 = sbr.rel (0) target = $region21
    $region20: #{tpu_custom_call.1} parent=1 // pred_region
      _
    $region21: #{tpu_custom_call.1} parent=1 // pred_fallthru
      _
    // Predicated region
    $region22: #{tpu_custom_call.1} parent=1 // pred_check
      _
    $region23: #{tpu_custom_call.1} parent=1 // pred_check_branch
      %55 = sbr.rel (0) target = $region25
    $region24: #{tpu_custom_call.1} parent=1 // pred_region
      %s57 = ssub.s32 4096, 4096
      %58 = vsyncadd [#allocation9], %s57
      %s59 = sshll.u32 [#allocation8], 4
      %s60 = int_to_ptr.vmem [resolvable:$true] %s59
      %65 = dma.hbm_to_vmem [thread:$0]  %s5, 4096, %s60, [#allocation9], 128, 128, 8
    $region25: #{tpu_custom_call.1} parent=1 // pred_fallthru
      _
    // Predicated region
    $region26: #{tpu_custom_call.1} parent=1 // pred_check
      _
    $region27: #{tpu_custom_call.1} parent=1 // pred_check_branch
      %67 = sbr.rel (0) target = $region29
    $region28: #{tpu_custom_call.1} parent=1 // pred_region
      _
    $region29: #{tpu_custom_call.1} parent=1 // pred_fallthru
      _
    // Predicated region
    $region30: #{tpu_custom_call.1} parent=1 // pred_check
      _
    $region31: #{tpu_custom_call.1} parent=1 // pred_check_branch
      %69 = sbr.rel (0) target = $region33
    $region32: #{tpu_custom_call.1} parent=1 // pred_region
      %70 = dma.done [#allocation3], 128
    $region33: #{tpu_custom_call.1} parent=1 // pred_fallthru
      _
    // Predicated region
    $region34: #{tpu_custom_call.1} parent=1 // pred_check
      _
    $region35: #{tpu_custom_call.1} parent=1 // pred_check_branch
      %72 = sbr.rel (0) target = $region37
    $region36: #{tpu_custom_call.1} parent=1 // pred_region
      %73 = dma.done [#allocation6], 2048
    $region37: #{tpu_custom_call.1} parent=1 // pred_fallthru
      _
    // Predicated region
    $region38: #{tpu_custom_call.1} parent=1 // pred_check
      _
    $region39: #{tpu_custom_call.1} parent=1 // pred_check_branch
      %75 = sbr.rel (0) target = $region41
    $region40: #{tpu_custom_call.1} parent=1 // pred_region
      %76 = dma.done [#allocation6], 2048
    $region41: #{tpu_custom_call.1} parent=1 // pred_fallthru
      _
    // Predicated region
    $region42: #{tpu_custom_call.1} parent=1 // pred_check
      _
    $region43: #{tpu_custom_call.1} parent=1 // pred_check_branch
      %78 = sbr.rel (0) target = $region45
    $region44: #{tpu_custom_call.1} parent=1 // pred_region
      %79 = dma.done [#allocation9], 4096
    $region45: #{tpu_custom_call.1} parent=1 // pred_fallthru
      _
    %v81 = vld [vmem:[#allocation2] sm:$0xff]
    %v82 = vpack.c.bf16 %v81, %v81
    %v83 = vld [vmem:[#allocation5] sm:$0xff]
    %v84 = vld [vmem:[#allocation5 + $0x8] sm:$0xff]
    %v85 = vld [vmem:[#allocation5 + $0x10] sm:$0xff]
    %v86 = vld [vmem:[#allocation5 + $0x18] sm:$0xff]
    %v87 = vld [vmem:[#allocation5 + $0x20] sm:$0xff]
    %v88 = vld [vmem:[#allocation5 + $0x28] sm:$0xff]
    %v89 = vld [vmem:[#allocation5 + $0x30] sm:$0xff]
    %v90 = vld [vmem:[#allocation5 + $0x38] sm:$0xff]
    %v91 = vld [vmem:[#allocation5 + $0x40] sm:$0xff]
    %v92 = vld [vmem:[#allocation5 + $0x48] sm:$0xff]
    %v93 = vld [vmem:[#allocation5 + $0x50] sm:$0xff]
    %v94 = vld [vmem:[#allocation5 + $0x58] sm:$0xff]
    %v95 = vld [vmem:[#allocation5 + $0x60] sm:$0xff]
    %v96 = vld [vmem:[#allocation5 + $0x68] sm:$0xff]
    %v97 = vld [vmem:[#allocation5 + $0x70] sm:$0xff]
    %v98 = vld [vmem:[#allocation5 + $0x78] sm:$0xff]
    %v99 = vld [vmem:[%s3] sm:$0x3]
    %v101 = vlaneseq
    %v102 = vshrl.u32 %v101, 7
    %v103 = vsub.s32 0, %v102
    %v104 = vrot.slane %v99, %v103
    %v105 = vlaneseq
    %v106 = vshrl.u32 %v105, 7
    %v107 = vsub.s32 1, %v106
    %v108 = vrot.slane %v99, %v107
    %v127 = vunpack.c.l.b16 %v83
    %v128 = vunpack.c.h.b16 %v83
    %v129 = vunpack.c.l.b16 %v84
    %v130 = vunpack.c.h.b16 %v84
    %v131 = vunpack.c.l.b16 %v85
    %v132 = vunpack.c.h.b16 %v85
    %v133 = vunpack.c.l.b16 %v86
    %v134 = vunpack.c.h.b16 %v86
    %v135 = vunpack.c.l.b16 %v87
    %v136 = vunpack.c.h.b16 %v87
    %v137 = vunpack.c.l.b16 %v88
    %v138 = vunpack.c.h.b16 %v88
    %v139 = vunpack.c.l.b16 %v89
    %v140 = vunpack.c.h.b16 %v89
    %v141 = vunpack.c.l.b16 %v90
    %v142 = vunpack.c.h.b16 %v90
    %v143 = vunpack.c.l.b16 %v91
    %v144 = vunpack.c.h.b16 %v91
    %v145 = vunpack.c.l.b16 %v92
    %v146 = vunpack.c.h.b16 %v92
    %v147 = vunpack.c.l.b16 %v93
    %v148 = vunpack.c.h.b16 %v93
    %v149 = vunpack.c.l.b16 %v94
    %v150 = vunpack.c.h.b16 %v94
    %v151 = vunpack.c.l.b16 %v95
    %v152 = vunpack.c.h.b16 %v95
    %v153 = vunpack.c.l.b16 %v96
    %v154 = vunpack.c.h.b16 %v96
    %v155 = vunpack.c.l.b16 %v97
    %v156 = vunpack.c.h.b16 %v97
    %v157 = vunpack.c.l.b16 %v98
    %v158 = vunpack.c.h.b16 %v98
    %v159 = vpack.c.b16 %v129, %v127
    %v160 = vpack.c.b16 %v130, %v128
    %v161 = vpack.c.b16 %v133, %v131
    %v162 = vpack.c.b16 %v134, %v132
    %v163 = vpack.c.b16 %v137, %v135
    %v164 = vpack.c.b16 %v138, %v136
    %v165 = vpack.c.b16 %v141, %v139
    %v166 = vpack.c.b16 %v142, %v140
    %v167 = vpack.c.b16 %v145, %v143
    %v168 = vpack.c.b16 %v146, %v144
    %v169 = vpack.c.b16 %v149, %v147
    %v170 = vpack.c.b16 %v150, %v148
    %v171 = vpack.c.b16 %v153, %v151
    %v172 = vpack.c.b16 %v154, %v152
    %v173 = vpack.c.b16 %v157, %v155
    %v174 = vpack.c.b16 %v158, %v156
    %191 = vmatprep.subr.bf16.mxu0 %v160
    %192 = vmatpush1.bf16.msra.mxu0 %v159
    %193 = vmatprep.subr.bf16.mxu0 %v162
    %194 = vmatpush1.bf16.msra.mxu0 %v161
    %195 = vmatprep.subr.bf16.mxu0 %v164
    %196 = vmatpush1.bf16.msra.mxu0 %v163
    %197 = vmatprep.subr.bf16.mxu0 %v166
    %198 = vmatpush1.bf16.msra.mxu0 %v165
    %199 = vmatprep.subr.bf16.mxu0 %v168
    %200 = vmatpush1.bf16.msra.mxu0 %v167
    %201 = vmatprep.subr.bf16.mxu0 %v170
    %202 = vmatpush1.bf16.msra.mxu0 %v169
    %203 = vmatprep.subr.bf16.mxu0 %v172
    %204 = vmatpush1.bf16.msra.mxu0 %v171
    %205 = vmatprep.subr.bf16.mxu0 %v174
    %206 = vmatpush1.bf16.msra.mxu0 %v173
    %207 = vmatprep.subr.bf16.mxu0 0
    %208 = vmatpush1.bf16.msra.mxu0 0
    %209 = vmatprep.subr.bf16.mxu0 0
    %210 = vmatpush1.bf16.msra.mxu0 0
    %211 = vmatprep.subr.bf16.mxu0 0
    %212 = vmatpush1.bf16.msra.mxu0 0
    %213 = vmatprep.subr.bf16.mxu0 0
    %214 = vmatpush1.bf16.msra.mxu0 0
    %215 = vmatprep.subr.bf16.mxu0 0
    %216 = vmatpush1.bf16.msra.mxu0 0
    %217 = vmatprep.subr.bf16.mxu0 0
    %218 = vmatpush1.bf16.msra.mxu0 0
    %219 = vmatprep.subr.bf16.mxu0 0
    %220 = vmatpush1.bf16.msra.mxu0 0
    %221 = vmatprep.subr.bf16.mxu0 0
    %222 = vmatpush1.bf16.msra.mxu0 0
    %223 = vmatprep.mubr.bf16.mxu0 0
    %224 = vmatmul.mubr.bf16.gmra.mrb[0].mxu0 %v82
    %v225 = vpop.f32.mrb[0].mxu0
    %v226 = vadd.f32 %v104, %v225
    %v227 = vpop.f32.mrb[0].mxu0
    %v228 = vadd.f32 %v108, %v227
    %v229 = vpop.f32.mrb[0].mxu0
    %v230 = vpop.f32.mrb[0].mxu0
    %231 = vdwg.mxu0
    %v232 = vld [vmem:[#allocation7] sm:$0xff]
    %v233 = vld [vmem:[#allocation7 + $0x8] sm:$0xff]
    %v234 = vld [vmem:[#allocation7 + $0x10] sm:$0xff]
    %v235 = vld [vmem:[#allocation7 + $0x18] sm:$0xff]
    %v236 = vld [vmem:[#allocation7 + $0x20] sm:$0xff]
    %v237 = vld [vmem:[#allocation7 + $0x28] sm:$0xff]
    %v238 = vld [vmem:[#allocation7 + $0x30] sm:$0xff]
    %v239 = vld [vmem:[#allocation7 + $0x38] sm:$0xff]
    %v240 = vld [vmem:[#allocation7 + $0x40] sm:$0xff]
    %v241 = vld [vmem:[#allocation7 + $0x48] sm:$0xff]
    %v242 = vld [vmem:[#allocation7 + $0x50] sm:$0xff]
    %v243 = vld [vmem:[#allocation7 + $0x58] sm:$0xff]
    %v244 = vld [vmem:[#allocation7 + $0x60] sm:$0xff]
    %v245 = vld [vmem:[#allocation7 + $0x68] sm:$0xff]
    %v246 = vld [vmem:[#allocation7 + $0x70] sm:$0xff]
    %v247 = vld [vmem:[#allocation7 + $0x78] sm:$0xff]
    %v248 = vld [vmem:[%s4] sm:$0x3]
    %v250 = vlaneseq
    %v251 = vshrl.u32 %v250, 7
    %v252 = vsub.s32 0, %v251
    %v253 = vrot.slane %v248, %v252
    %v254 = vlaneseq
    %v255 = vshrl.u32 %v254, 7
    %v256 = vsub.s32 1, %v255
    %v257 = vrot.slane %v248, %v256
    %v276 = vunpack.c.l.b16 %v232
    %v277 = vunpack.c.h.b16 %v232
    %v278 = vunpack.c.l.b16 %v233
    %v279 = vunpack.c.h.b16 %v233
    %v280 = vunpack.c.l.b16 %v234
    %v281 = vunpack.c.h.b16 %v234
    %v282 = vunpack.c.l.b16 %v235
    %v283 = vunpack.c.h.b16 %v235
    %v284 = vunpack.c.l.b16 %v236
    %v285 = vunpack.c.h.b16 %v236
    %v286 = vunpack.c.l.b16 %v237
    %v287 = vunpack.c.h.b16 %v237
    %v288 = vunpack.c.l.b16 %v238
    %v289 = vunpack.c.h.b16 %v238
    %v290 = vunpack.c.l.b16 %v239
    %v291 = vunpack.c.h.b16 %v239
    %v292 = vunpack.c.l.b16 %v240
    %v293 = vunpack.c.h.b16 %v240
    %v294 = vunpack.c.l.b16 %v241
    %v295 = vunpack.c.h.b16 %v241
    %v296 = vunpack.c.l.b16 %v242
    %v297 = vunpack.c.h.b16 %v242
    %v298 = vunpack.c.l.b16 %v243
    %v299 = vunpack.c.h.b16 %v243
    %v300 = vunpack.c.l.b16 %v244
    %v301 = vunpack.c.h.b16 %v244
    %v302 = vunpack.c.l.b16 %v245
    %v303 = vunpack.c.h.b16 %v245
    %v304 = vunpack.c.l.b16 %v246
    %v305 = vunpack.c.h.b16 %v246
    %v306 = vunpack.c.l.b16 %v247
    %v307 = vunpack.c.h.b16 %v247
    %v308 = vpack.c.b16 %v278, %v276
    %v309 = vpack.c.b16 %v279, %v277
    %v310 = vpack.c.b16 %v282, %v280
    %v311 = vpack.c.b16 %v283, %v281
    %v312 = vpack.c.b16 %v286, %v284
    %v313 = vpack.c.b16 %v287, %v285
    %v314 = vpack.c.b16 %v290, %v288
    %v315 = vpack.c.b16 %v291, %v289
    %v316 = vpack.c.b16 %v294, %v292
    %v317 = vpack.c.b16 %v295, %v293
    %v318 = vpack.c.b16 %v298, %v296
    %v319 = vpack.c.b16 %v299, %v297
    %v320 = vpack.c.b16 %v302, %v300
    %v321 = vpack.c.b16 %v303, %v301
    %v322 = vpack.c.b16 %v306, %v304
    %v323 = vpack.c.b16 %v307, %v305
    %340 = vmatprep.subr.bf16.mxu0 %v309
    %341 = vmatpush1.bf16.msra.mxu0 %v308
    %342 = vmatprep.subr.bf16.mxu0 %v311
    %343 = vmatpush1.bf16.msra.mxu0 %v310
    %344 = vmatprep.subr.bf16.mxu0 %v313
    %345 = vmatpush1.bf16.msra.mxu0 %v312
    %346 = vmatprep.subr.bf16.mxu0 %v315
    %347 = vmatpush1.bf16.msra.mxu0 %v314
    %348 = vmatprep.subr.bf16.mxu0 %v317
    %349 = vmatpush1.bf16.msra.mxu0 %v316
    %350 = vmatprep.subr.bf16.mxu0 %v319
    %351 = vmatpush1.bf16.msra.mxu0 %v318
    %352 = vmatprep.subr.bf16.mxu0 %v321
    %353 = vmatpush1.bf16.msra.mxu0 %v320
    %354 = vmatprep.subr.bf16.mxu0 %v323
    %355 = vmatpush1.bf16.msra.mxu0 %v322
    %356 = vmatprep.subr.bf16.mxu0 0
    %357 = vmatpush1.bf16.msra.mxu0 0
    %358 = vmatprep.subr.bf16.mxu0 0
    %359 = vmatpush1.bf16.msra.mxu0 0
    %360 = vmatprep.subr.bf16.mxu0 0
    %361 = vmatpush1.bf16.msra.mxu0 0
    %362 = vmatprep.subr.bf16.mxu0 0
    %363 = vmatpush1.bf16.msra.mxu0 0
    %364 = vmatprep.subr.bf16.mxu0 0
    %365 = vmatpush1.bf16.msra.mxu0 0
    %366 = vmatprep.subr.bf16.mxu0 0
    %367 = vmatpush1.bf16.msra.mxu0 0
    %368 = vmatprep.subr.bf16.mxu0 0
    %369 = vmatpush1.bf16.msra.mxu0 0
    %370 = vmatprep.subr.bf16.mxu0 0
    %371 = vmatpush1.bf16.msra.mxu0 0
    %372 = vmatprep.mubr.bf16.mxu0 0
    %373 = vmatmul.mubr.bf16.gmra.mrb[0].mxu0 %v82
    %v374 = vpop.f32.mrb[0].mxu0
    %v375 = vadd.f32 %v253, %v374
    %v376 = vpop.f32.mrb[0].mxu0
    %v377 = vadd.f32 %v257, %v376
    %v378 = vpop.f32.mrb[0].mxu0
    %v379 = vpop.f32.mrb[0].mxu0
    %380 = vdwg.mxu0
    %v381 = vxor.u32 %v226, 2147483648
    %v382 = vxor.u32 %v228, 2147483648
    %v383 = vmul.f32 %v381, 1.442695
    %v384 = vpow.pop %v383
    %v385 = vmul.f32 %v382, 1.442695
    %v386 = vpow.pop %v385
    %v387 = vadd.f32 %v384, 1.0
    %v388 = vadd.f32 %v386, 1.0
    %v389 = vrcp.pop %v387
    %v390 = vmul.f32 1.0, %v389
    %v391 = vrcp.pop %v388
    %v392 = vmul.f32 1.0, %v391
    %v393 = vmul.f32 %v226, %v390
    %v394 = vmul.f32 %v228, %v392
    %v395 = vmul.f32 %v393, %v375
    %v396 = vmul.f32 %v394, %v377
    %v397 = vld [vmem:[#allocation8] sm:$0xff]
    %v398 = vld [vmem:[#allocation8 + $0x8] sm:$0xff]
    %v399 = vld [vmem:[#allocation8 + $0x10] sm:$0xff]
    %v400 = vld [vmem:[#allocation8 + $0x18] sm:$0xff]
    %v401 = vld [vmem:[#allocation8 + $0x20] sm:$0xff]
    %v402 = vld [vmem:[#allocation8 + $0x28] sm:$0xff]
    %v403 = vld [vmem:[#allocation8 + $0x30] sm:$0xff]
    %v404 = vld [vmem:[#allocation8 + $0x38] sm:$0xff]
    %v405 = vld [vmem:[#allocation8 + $0x40] sm:$0xff]
    %v406 = vld [vmem:[#allocation8 + $0x48] sm:$0xff]
    %v407 = vld [vmem:[#allocation8 + $0x50] sm:$0xff]
    %v408 = vld [vmem:[#allocation8 + $0x58] sm:$0xff]
    %v409 = vld [vmem:[#allocation8 + $0x60] sm:$0xff]
    %v410 = vld [vmem:[#allocation8 + $0x68] sm:$0xff]
    %v411 = vld [vmem:[#allocation8 + $0x70] sm:$0xff]
    %v412 = vld [vmem:[#allocation8 + $0x78] sm:$0xff]
    %v413 = vld [vmem:[#allocation8 + $0x80] sm:$0xff]
    %v414 = vld [vmem:[#allocation8 + $0x88] sm:$0xff]
    %v415 = vld [vmem:[#allocation8 + $0x90] sm:$0xff]
    %v416 = vld [vmem:[#allocation8 + $0x98] sm:$0xff]
    %v417 = vld [vmem:[#allocation8 + $0xa0] sm:$0xff]
    %v418 = vld [vmem:[#allocation8 + $0xa8] sm:$0xff]
    %v419 = vld [vmem:[#allocation8 + $0xb0] sm:$0xff]
    %v420 = vld [vmem:[#allocation8 + $0xb8] sm:$0xff]
    %v421 = vld [vmem:[#allocation8 + $0xc0] sm:$0xff]
    %v422 = vld [vmem:[#allocation8 + $0xc8] sm:$0xff]
    %v423 = vld [vmem:[#allocation8 + $0xd0] sm:$0xff]
    %v424 = vld [vmem:[#allocation8 + $0xd8] sm:$0xff]
    %v425 = vld [vmem:[#allocation8 + $0xe0] sm:$0xff]
    %v426 = vld [vmem:[#allocation8 + $0xe8] sm:$0xff]
    %v427 = vld [vmem:[#allocation8 + $0xf0] sm:$0xff]
    %v428 = vld [vmem:[#allocation8 + $0xf8] sm:$0xff]
    %v429 = vld [vmem:[%s6] sm:$0x1]
    %v431 = vlaneseq
    %v432 = vshrl.u32 %v431, 7
    %v433 = vsub.s32 0, %v432
    %v434 = vrot.slane %v429, %v433
    %436 = vmatprep.subr.mxu0 0.0
    %437 = vmatpush1.msra.mxu0 %v397
    %438 = vmatprep.subr.mxu0 0.0
    %439 = vmatpush1.msra.mxu0 %v398
    %440 = vmatprep.subr.mxu0 0.0
    %441 = vmatpush1.msra.mxu0 %v399
    %442 = vmatprep.subr.mxu0 0.0
    %443 = vmatpush1.msra.mxu0 %v400
    %444 = vmatprep.subr.mxu0 0.0
    %445 = vmatpush1.msra.mxu0 %v401
    %446 = vmatprep.subr.mxu0 0.0
    %447 = vmatpush1.msra.mxu0 %v402
    %448 = vmatprep.subr.mxu0 0.0
    %449 = vmatpush1.msra.mxu0 %v403
    %450 = vmatprep.subr.mxu0 0.0
    %451 = vmatpush1.msra.mxu0 %v404
    %452 = vmatprep.subr.mxu0 0.0
    %453 = vmatpush1.msra.mxu0 %v405
    %454 = vmatprep.subr.mxu0 0.0
    %455 = vmatpush1.msra.mxu0 %v406
    %456 = vmatprep.subr.mxu0 0.0
    %457 = vmatpush1.msra.mxu0 %v407
    %458 = vmatprep.subr.mxu0 0.0
    %459 = vmatpush1.msra.mxu0 %v408
    %460 = vmatprep.subr.mxu0 0.0
    %461 = vmatpush1.msra.mxu0 %v409
    %462 = vmatprep.subr.mxu0 0.0
    %463 = vmatpush1.msra.mxu0 %v410
    %464 = vmatprep.subr.mxu0 0.0
    %465 = vmatpush1.msra.mxu0 %v411
    %466 = vmatprep.subr.mxu0 0.0
    %467 = vmatpush1.msra.mxu0 %v412
    %468 = vmatprep.subr.mxu0 0.0
    %469 = vmatpush1.msra.mxu0 %v413
    %470 = vmatprep.subr.mxu0 0.0
    %471 = vmatpush1.msra.mxu0 %v414
    %472 = vmatprep.subr.mxu0 0.0
    %473 = vmatpush1.msra.mxu0 %v415
    %474 = vmatprep.subr.mxu0 0.0
    %475 = vmatpush1.msra.mxu0 %v416
    %476 = vmatprep.subr.mxu0 0.0
    %477 = vmatpush1.msra.mxu0 %v417
    %478 = vmatprep.subr.mxu0 0.0
    %479 = vmatpush1.msra.mxu0 %v418
    %480 = vmatprep.subr.mxu0 0.0
    %481 = vmatpush1.msra.mxu0 %v419
    %482 = vmatprep.subr.mxu0 0.0
    %483 = vmatpush1.msra.mxu0 %v420
    %484 = vmatprep.subr.mxu0 0.0
    %485 = vmatpush1.msra.mxu0 %v421
    %486 = vmatprep.subr.mxu0 0.0
    %487 = vmatpush1.msra.mxu0 %v422
    %488 = vmatprep.subr.mxu0 0.0
    %489 = vmatpush1.msra.mxu0 %v423
    %490 = vmatprep.subr.mxu0 0.0
    %491 = vmatpush1.msra.mxu0 %v424
    %492 = vmatprep.subr.mxu0 0.0
    %493 = vmatpush1.msra.mxu0 %v425
    %494 = vmatprep.subr.mxu0 0.0
    %495 = vmatpush1.msra.mxu0 %v426
    %496 = vmatprep.subr.mxu0 0.0
    %497 = vmatpush1.msra.mxu0 %v427
    %498 = vmatprep.subr.mxu0 0.0
    %499 = vmatpush1.msra.mxu0 %v428
    %500 = vmatprep.mubr.f32.mxu0 %v396
    %501 = vmatmul.mubr.f32.gmra.mrb[0].mxu0 %v395
    %v502 = vpop.f32.mrb[0].mxu0
    %v503 = vadd.f32 %v434, %v502
    %v504 = vpop.f32.mrb[0].mxu0
    %505 = vdwg.mxu0
    %506 = vst [vmem:[#allocation10] sm:$0xff] %v503
    // Predicated region
    $region46: #{tpu_custom_call.1} parent=1 // pred_check
      _
    $region47: #{tpu_custom_call.1} parent=1 // pred_check_branch
      %508 = sbr.rel (0) target = $region49
    $region48: #{tpu_custom_call.1} parent=1 // pred_region
      %s510 = ssub.s32 128, 128
      %511 = vsyncadd [#allocation4], %s510
      %s513 = sshll.u32 [#allocation10], 4
      %s514 = int_to_ptr.vmem [resolvable:$true] %s513
      %516 = dma.vmem_to_hbm [thread:$0]  %s514, 128, %s7, [#allocation4]
    $region49: #{tpu_custom_call.1} parent=1 // pred_fallthru
      _
    // Predicated region
    $region50: #{tpu_custom_call.1} parent=1 // pred_check
      _
    $region51: #{tpu_custom_call.1} parent=1 // pred_check_branch
      %518 = sbr.rel (0) target = $region53
    $region52: #{tpu_custom_call.1} parent=1 // pred_region
      %519 = dma.done [#allocation4], 128
    $region53: #{tpu_custom_call.1} parent=1 // pred_fallthru
      _
    %520 = vsyncpa [#allocation3], 1
    %521 = vsyncpa [#allocation6], 1
    %522 = vsyncpa [#allocation9], 1
    %523 = vsyncpa [#allocation4], 1

</llo_original>
